<compile_context>
chip_gen: v7x
topology: tpu7x:2x2x1
jax: 0.10.0
libtpu: 0.0.40
codegen_flags: <defaults>
</compile_context>

<pallas_src>
import math
import functools

import jax
import jax.numpy as jnp
from jax.experimental import pallas as pl
from jax.experimental.pallas import tpu as pltpu

BN_EPS = 1e-5
NUM_CLASSES = 1000


def _round_up(x, m):
    return (x + m - 1) // m * m


def _pad_c(c):
    return _round_up(c, 128)


# ------------------------------------------------------------------ in-kernel activation helpers

def _silu(y):          # y: f32
    return y * pl.reciprocal(1.0 + jnp.exp(-y), approx=True)


def _sigmoid(y):       # y: f32
    return pl.reciprocal(1.0 + jnp.exp(-y), approx=True)


# ----------------------------------------------------------------------------- fused conv kernel

def _make_conv_kernel(act, with_scale, with_res):
    """MXU matmul + folded-BN affine (+SE scale on A, +residual) + activation epilogue."""
    def kernel(*refs):
        i = 0
        a_ref = refs[i]; i += 1
        w_ref = refs[i]; i += 1
        se_ref = None
        if with_scale:
            se_ref = refs[i]; i += 1
        s_ref = refs[i]; i += 1
        b_ref = refs[i]; i += 1
        r_ref = None
        if with_res:
            r_ref = refs[i]; i += 1
        o_ref = refs[i]

        a = a_ref[0]                                           # (bm, Kp) bf16
        if with_scale:
            a = a * se_ref[0].astype(jnp.bfloat16)             # SE excitation on A operand
        y = jnp.dot(a, w_ref[...], preferred_element_type=jnp.float32)
        y = y * s_ref[...] + b_ref[...]                        # folded BN / bias
        if act == "silu":
            y = _silu(y)
        elif act == "sigmoid":
            y = _sigmoid(y)
        if with_res:
            y = y + r_ref[0].astype(jnp.float32)               # residual add
        o_ref[0] = y.astype(o_ref.dtype)
    return kernel


@functools.partial(jax.jit, static_argnames=("act",))
def fused_conv3d(a, w, s, b, se=None, res=None, *, act):
    """a:(N,L,Kp) bf16 @ w:(Kp,Np) bf16, per-channel affine s,b:(Np,) f32, optional per-(batch,
    channel) SE scale se:(N,1,Kp) f32 applied to A, optional residual res:(N,L,Np) bf16, fused
    activation.  Returns (N,L,Np) bf16."""
    N, L, Kp = a.shape
    Np = w.shape[1]
    bm = min(256, _round_up(L, 8))
    Lp = _round_up(L, bm)
    if Lp != L:
        a = jnp.pad(a, ((0, 0), (0, Lp - L), (0, 0)))
        if res is not None:
            res = jnp.pad(res, ((0, 0), (0, Lp - L), (0, 0)))

    args = [a, w]
    in_specs = [pl.BlockSpec((1, bm, Kp), lambda n, i: (n, i, 0)),
                pl.BlockSpec((Kp, Np), lambda n, i: (0, 0))]
    if se is not None:
        args.append(se)
        in_specs.append(pl.BlockSpec((1, 1, Kp), lambda n, i: (n, 0, 0)))
    args += [s.reshape(1, Np), b.reshape(1, Np)]
    in_specs += [pl.BlockSpec((1, Np), lambda n, i: (0, 0)),
                 pl.BlockSpec((1, Np), lambda n, i: (0, 0))]
    if res is not None:
        args.append(res)
        in_specs.append(pl.BlockSpec((1, bm, Np), lambda n, i: (n, i, 0)))

    out = pl.pallas_call(
        _make_conv_kernel(act, se is not None, res is not None),
        out_shape=jax.ShapeDtypeStruct((N, Lp, Np), jnp.bfloat16),
        grid=(N, Lp // bm),
        in_specs=in_specs,
        out_specs=pl.BlockSpec((1, bm, Np), lambda n, i: (n, i, 0)),
        compiler_params=pltpu.CompilerParams(
            dimension_semantics=("parallel", "parallel")),
    )(*args)
    return out[:, :L, :] if Lp != L else out


# ------------------------------------------------------------------------------- depthwise conv

def _dw_kernel(p_ref, w_ref, s_ref, b_ref, o_ref, acc_ref):
    t = pl.program_id(1)

    @pl.when(t == 0)
    def _():
        acc_ref[...] = jnp.zeros_like(acc_ref)

    acc_ref[...] += p_ref[0].astype(jnp.float32) * w_ref[0]

    @pl.when(t == pl.num_programs(1) - 1)
    def _():
        y = acc_ref[...] * s_ref[...] + b_ref[...]
        o_ref[...] = _silu(y).astype(o_ref.dtype)


@functools.partial(jax.jit, static_argnames=("stride", "padding"))
def depthwise_conv_bn_silu(x, w, s, b, *, stride, padding):
    """x:(N,H,W,Cp) bf16, w:(k*k,1,Cp) f32, s,b:(Cp,) f32 -> (N,Ho,Wo,Cp) bf16.
    Taps form a reduction grid axis -> only one (bm,Cp) tap block resident in VMEM at a time."""
    N, H, W, Cp = x.shape
    kk = w.shape[0]
    k = int(round(math.sqrt(kk)))
    Ho = (H + 2 * padding - k) // stride + 1
    Wo = (W + 2 * padding - k) // stride + 1
    xp = jnp.pad(x, ((0, 0), (padding, padding), (padding, padding), (0, 0)))
    taps = []
    for dy in range(k):
        for dx in range(k):
            taps.append(xp[:, dy:dy + stride * (Ho - 1) + 1:stride,
                           dx:dx + stride * (Wo - 1) + 1:stride, :])
    M = N * Ho * Wo
    pats = jnp.stack(taps, axis=0).reshape(kk, M, Cp)
    bm = min(512 if Cp <= 1536 else 256, _round_up(M, 8))
    Mp = _round_up(M, bm)
    if Mp != M:
        pats = jnp.pad(pats, ((0, 0), (0, Mp - M), (0, 0)))
    out = pl.pallas_call(
        _dw_kernel,
        out_shape=jax.ShapeDtypeStruct((Mp, Cp), jnp.bfloat16),
        grid=(Mp // bm, kk),
        in_specs=[pl.BlockSpec((1, bm, Cp), lambda i, t: (t, i, 0)),
                  pl.BlockSpec((1, 1, Cp), lambda i, t: (t, 0, 0)),
                  pl.BlockSpec((1, Cp), lambda i, t: (0, 0)),
                  pl.BlockSpec((1, Cp), lambda i, t: (0, 0))],
        out_specs=pl.BlockSpec((bm, Cp), lambda i, t: (i, 0)),
        scratch_shapes=[pltpu.VMEM((bm, Cp), jnp.float32)],
        compiler_params=pltpu.CompilerParams(
            dimension_semantics=("parallel", "arbitrary")),
    )(pats, w, s.reshape(1, Cp), b.reshape(1, Cp))
    return out[:M].reshape(N, Ho, Wo, Cp)


# -------------------------------------------------------------------- fused squeeze-excitation

def _se_kernel(x_ref, w1_ref, b1_ref, w2_ref, b2_ref, o_ref, *, inv_hw):
    pooled = jnp.sum(x_ref[0].astype(jnp.float32), axis=0, keepdims=True) * inv_hw
    p8 = jnp.broadcast_to(pooled, (8, pooled.shape[1])).astype(jnp.bfloat16)
    h = jnp.dot(p8, w1_ref[...], preferred_element_type=jnp.float32) + b1_ref[...]
    h = _silu(h)
    z = jnp.dot(h.astype(jnp.bfloat16), w2_ref[...],
                preferred_element_type=jnp.float32) + b2_ref[...]
    o_ref[0] = _sigmoid(z[0:1, :])


@jax.jit
def se_scale(x3, w1, b1, w2, b2):
    """x3:(N,HW,Cp) bf16 -> SE channel scale (N,1,Cp) f32 (avgpool+fc1+SiLU+fc2+Sigmoid)."""
    N, HW, Cp = x3.shape
    Sp = w1.shape[1]
    HWp = _round_up(HW, 8)
    if HWp != HW:
        x3 = jnp.pad(x3, ((0, 0), (0, HWp - HW), (0, 0)))
    return pl.pallas_call(
        functools.partial(_se_kernel, inv_hw=1.0 / HW),
        out_shape=jax.ShapeDtypeStruct((N, 1, Cp), jnp.float32),
        grid=(N,),
        in_specs=[pl.BlockSpec((1, HWp, Cp), lambda n: (n, 0, 0)),
                  pl.BlockSpec((Cp, Sp), lambda n: (0, 0)),
                  pl.BlockSpec((1, Sp), lambda n: (0, 0)),
                  pl.BlockSpec((Sp, Cp), lambda n: (0, 0)),
                  pl.BlockSpec((1, Cp), lambda n: (0, 0))],
        out_specs=pl.BlockSpec((1, 1, Cp), lambda n: (n, 0, 0)),
        compiler_params=pltpu.CompilerParams(dimension_semantics=("parallel",)),
    )(x3, w1, b1.reshape(1, Sp), w2, b2.reshape(1, Cp))


# --------------------------------------------------------------- fused global pool + classifier

def _pool_fc_kernel(x_ref, w_ref, b_ref, o_ref, *, inv_hw):
    pooled = jnp.sum(x_ref[0].astype(jnp.float32), axis=0, keepdims=True) * inv_hw
    p8 = jnp.broadcast_to(pooled, (8, pooled.shape[1])).astype(jnp.bfloat16)
    y = jnp.dot(p8, w_ref[...], preferred_element_type=jnp.float32) + b_ref[...]
    o_ref[0] = y[0:1, :]


@jax.jit
def global_pool_fc(x3, w, b):
    """x3:(N,HW,Cp) bf16 -> avgpool over HW then Linear -> (N,1,Np) f32."""
    N, HW, Cp = x3.shape
    Np = w.shape[1]
    HWp = _round_up(HW, 8)
    if HWp != HW:
        x3 = jnp.pad(x3, ((0, 0), (0, HWp - HW), (0, 0)))
    return pl.pallas_call(
        functools.partial(_pool_fc_kernel, inv_hw=1.0 / HW),
        out_shape=jax.ShapeDtypeStruct((N, 1, Np), jnp.float32),
        grid=(N,),
        in_specs=[pl.BlockSpec((1, HWp, Cp), lambda n: (n, 0, 0)),
                  pl.BlockSpec((Cp, Np), lambda n: (0, 0)),
                  pl.BlockSpec((1, Np), lambda n: (0, 0))],
        out_specs=pl.BlockSpec((1, 1, Np), lambda n: (n, 0, 0)),
        compiler_params=pltpu.CompilerParams(dimension_semantics=("parallel",)),
    )(x3, w, b.reshape(1, Np))


# ------------------------------------------------------------------- EfficientNet-B3 definition

def _make_divisible(v, divisor=8, min_value=None):
    if min_value is None:
        min_value = divisor
    new_v = max(min_value, int(v + divisor / 2) // divisor * divisor)
    if new_v < 0.9 * v:
        new_v += divisor
    return new_v


WIDTH_MULT, DEPTH_MULT = 1.2, 1.4


def _adj_c(c):
    return _make_divisible(c * WIDTH_MULT)


def _adj_d(d):
    return int(math.ceil(d * DEPTH_MULT))


# (expand_ratio, kernel, stride, input_channels, out_channels, num_layers) — EfficientNet v1 base
_BASE_CFG = [
    (1, 3, 1, 32, 16, 1),
    (6, 3, 2, 16, 24, 2),
    (6, 5, 2, 24, 40, 2),
    (6, 3, 2, 40, 80, 3),
    (6, 5, 1, 80, 112, 3),
    (6, 5, 2, 112, 192, 4),
    (6, 3, 1, 192, 320, 1),
]


def build_block_cfgs():
    cfgs = []
    for expand, k, stride, in_c, out_c, layers in _BASE_CFG:
        in_c, out_c, layers = _adj_c(in_c), _adj_c(out_c), _adj_d(layers)
        for i in range(layers):
            blk_in = in_c if i == 0 else out_c
            s = stride if i == 0 else 1
            cfgs.append(dict(expand=expand, k=k, stride=s, in_c=blk_in, out_c=out_c,
                             exp_c=blk_in * expand, sq_c=max(1, blk_in // 4)))
    return cfgs


def init_params(key, cfgs):
    keys = list(jax.random.split(key, 8 * len(cfgs) + 32))
    idx = [0]

    def nk():
        k = keys[idx[0]]
        idx[0] += 1
        return k

    def conv_w(fan_in, cout):
        return jax.random.normal(nk(), (fan_in, cout), jnp.float32) * math.sqrt(2.0 / fan_in)

    def dw_w(k, c):
        return jax.random.normal(nk(), (k, k, c), jnp.float32) * math.sqrt(2.0 / (k * k))

    def bn(c):
        return dict(gamma=jnp.ones((c,), jnp.float32), beta=jnp.zeros((c,), jnp.float32),
                    mean=jnp.zeros((c,), jnp.float32), var=jnp.ones((c,), jnp.float32))

    stem_out = _adj_c(32)  # 40
    params = dict(stem=dict(w=conv_w(3 * 3 * 3, stem_out), bn=bn(stem_out)), blocks=[])
    for cfg in cfgs:
        bp = {}
        if cfg['exp_c'] != cfg['in_c']:
            bp['expand'] = dict(w=conv_w(cfg['in_c'], cfg['exp_c']), bn=bn(cfg['exp_c']))
        bp['dw'] = dict(w=dw_w(cfg['k'], cfg['exp_c']), bn=bn(cfg['exp_c']))
        bp['se'] = dict(w1=conv_w(cfg['exp_c'], cfg['sq_c']),
                        b1=jnp.zeros((cfg['sq_c'],), jnp.float32),
                        w2=conv_w(cfg['sq_c'], cfg['exp_c']),
                        b2=jnp.zeros((cfg['exp_c'],), jnp.float32))
        bp['proj'] = dict(w=conv_w(cfg['exp_c'], cfg['out_c']), bn=bn(cfg['out_c']))
        params['blocks'].append(bp)
    last_in = cfgs[-1]['out_c']          # 384
    head_out = 4 * last_in               # 1536
    params['head'] = dict(w=conv_w(last_in, head_out), bn=bn(head_out))
    params['classifier'] = dict(
        w=jax.random.normal(nk(), (head_out, NUM_CLASSES), jnp.float32) * math.sqrt(1.0 / head_out),
        b=jnp.zeros((NUM_CLASSES,), jnp.float32))
    return params


def prepare_params(params, cfgs):
    """Fold BN into per-channel scale/bias, pad every tensor to lane-aligned (128) channel
    widths ONCE, and cast matmul weights to bf16 (MXU operands).  Padded lanes hold zeros."""
    def pad_mat(w, kp, np_):
        return jnp.zeros((kp, np_), jnp.bfloat16).at[:w.shape[0], :w.shape[1]].set(
            w.astype(jnp.bfloat16))

    def pad_vec(v, n):
        return jnp.zeros((n,), jnp.float32).at[:v.shape[0]].set(v.astype(jnp.float32))

    def fold_bn(bn_p, n):
        scale = bn_p['gamma'] / jnp.sqrt(bn_p['var'] + BN_EPS)
        bias = bn_p['beta'] - bn_p['mean'] * scale
        return pad_vec(scale, n), pad_vec(bias, n)

    dp = {}
    stem_out = params['stem']['w'].shape[1]
    cp = _pad_c(stem_out)
    s, b = fold_bn(params['stem']['bn'], cp)
    dp['stem'] = dict(w=pad_mat(params['stem']['w'], _pad_c(params['stem']['w'].shape[0]), cp),
                      s=s, b=b)
    dp['blocks'] = []
    for cfg, bp in zip(cfgs, params['blocks']):
        in_cp, exp_cp = _pad_c(cfg['in_c']), _pad_c(cfg['exp_c'])
        out_cp, sq_cp = _pad_c(cfg['out_c']), _pad_c(cfg['sq_c'])
        d = {}
        if 'expand' in bp:
            es, eb = fold_bn(bp['expand']['bn'], exp_cp)
            d['expand'] = dict(w=pad_mat(bp['expand']['w'], in_cp, exp_cp), s=es, b=eb)
        k = cfg['k']
        dw_w = jnp.zeros((k * k, 1, exp_cp), jnp.float32).at[:, 0, :cfg['exp_c']].set(
            bp['dw']['w'].reshape(k * k, cfg['exp_c']).astype(jnp.float32))
        ds_, db_ = fold_bn(bp['dw']['bn'], exp_cp)
        d['dw'] = dict(w=dw_w, s=ds_, b=db_)
        d['se'] = dict(w1=pad_mat(bp['se']['w1'], exp_cp, sq_cp),
                       b1=pad_vec(bp['se']['b1'], sq_cp),
                       w2=pad_mat(bp['se']['w2'], sq_cp, exp_cp),
                       b2=pad_vec(bp['se']['b2'], exp_cp))
        ps, pb = fold_bn(bp['proj']['bn'], out_cp)
        d['proj'] = dict(w=pad_mat(bp['proj']['w'], exp_cp, out_cp), s=ps, b=pb)
        dp['blocks'].append(d)
    last_cp = _pad_c(cfgs[-1]['out_c'])
    head_out = params['head']['w'].shape[1]
    hcp = _pad_c(head_out)
    hs, hb = fold_bn(params['head']['bn'], hcp)
    dp['head'] = dict(w=pad_mat(params['head']['w'], last_cp, hcp), s=hs, b=hb)
    ncp = _pad_c(NUM_CLASSES)
    dp['classifier'] = dict(w=pad_mat(params['classifier']['w'], hcp, ncp),
                            b=pad_vec(params['classifier']['b'], ncp))
    return dp


def mbconv(x, cfg, p):
    N, H, W, Cp = x.shape
    h3 = x.reshape(N, H * W, Cp)
    if 'expand' in p:
        h3 = fused_conv3d(h3, p['expand']['w'], p['expand']['s'], p['expand']['b'], act='silu')
    exp_cp = h3.shape[-1]
    h = depthwise_conv_bn_silu(h3.reshape(N, H, W, exp_cp), p['dw']['w'],
                               p['dw']['s'], p['dw']['b'],
                               stride=cfg['stride'], padding=(cfg['k'] - 1) // 2)
    _, Ho, Wo, _ = h.shape
    h3 = h.reshape(N, Ho * Wo, exp_cp)
    se = se_scale(h3, p['se']['w1'], p['se']['b1'], p['se']['w2'], p['se']['b2'])
    use_res = cfg['stride'] == 1 and cfg['in_c'] == cfg['out_c']
    res = x.reshape(N, H * W, Cp) if use_res else None
    # StochasticDepth is identity in eval mode, so only the (fused) residual add remains.
    out3 = fused_conv3d(h3, p['proj']['w'], p['proj']['s'], p['proj']['b'],
                        se=se, res=res, act='none')
    return out3.reshape(N, Ho, Wo, out3.shape[-1])


def efficientnet_b3_forward(dparams, cfgs, x_nchw):
    # NCHW (PyTorch) -> NHWC; channels feed the TPU lane dimension (padded to 128 multiples).
    x = jnp.transpose(x_nchw.astype(jnp.float32), (0, 2, 3, 1))
    N, H, W, _ = x.shape
    # stem: Conv 3x3 s2 p1 (im2col) + BN + SiLU fused in one matmul kernel
    k, stride, pad = 3, 2, 1
    Ho = (H + 2 * pad - k) // stride + 1
    Wo = (W + 2 * pad - k) // stride + 1
    xp = jnp.pad(x, ((0, 0), (pad, pad), (pad, pad), (0, 0)))
    taps = []
    for dy in range(k):
        for dx in range(k):
            taps.append(xp[:, dy:dy + stride * (Ho - 1) + 1:stride,
                           dx:dx + stride * (Wo - 1) + 1:stride, :])
    a = jnp.stack(taps, axis=3).reshape(N, Ho * Wo, k * k * 3)
    Kp = dparams['stem']['w'].shape[0]
    a = jnp.pad(a, ((0, 0), (0, 0), (0, Kp - a.shape[-1]))).astype(jnp.bfloat16)
    h = fused_conv3d(a, dparams['stem']['w'], dparams['stem']['s'], dparams['stem']['b'],
                     act='silu')
    x = h.reshape(N, Ho, Wo, h.shape[-1])
    # 26 MBConv blocks
    for cfg, bp in zip(cfgs, dparams['blocks']):
        x = mbconv(x, cfg, bp)
    # head: Conv 1x1 + BN + SiLU
    N2, H2, W2, Cp = x.shape
    h3 = fused_conv3d(x.reshape(N2, H2 * W2, Cp), dparams['head']['w'],
                      dparams['head']['s'], dparams['head']['b'], act='silu')
    # global average pool -> Dropout(0.3)[identity in eval] -> Linear(1536, 1000), fused
    logits = global_pool_fc(h3, dparams['classifier']['w'], dparams['classifier']['b'])
    y = logits[:, 0, :NUM_CLASSES]
    return {'hidden': y, 'logits': y}


if __name__ == "__main__":
    key = jax.random.PRNGKey(0)
    pkey, xkey = jax.random.split(key)

    cfgs = build_block_cfgs()
    assert len(cfgs) == 26  # EfficientNet-B3 has 26 MBConv blocks
    params = init_params(pkey, cfgs)
    dparams = prepare_params(params, cfgs)

    # Small synthetic image batch (NCHW, 3 channels as the network requires).
    x = jax.random.normal(xkey, (2, 3, 32, 32), jnp.float32)

    out = efficientnet_b3_forward(dparams, cfgs, x)
    out = jax.block_until_ready(out)

    assert out['logits'].shape == (2, NUM_CLASSES)
    assert out['hidden'].shape == (2, NUM_CLASSES)
    assert out['logits'].dtype == jnp.float32
    assert bool(jnp.all(jnp.isfinite(out['logits'])))
    print("KERNEL_OK")
</pallas_src>

<mosaic_0001>
module attributes {stable_mosaic.version = 11 : i64} {
  func.func @kernel(%arg0: i32, %arg1: i32, %arg2: memref<1x256x128xbf16, #tpu.memory_space<vmem>>, %arg3: memref<128x128xbf16, #tpu.memory_space<vmem>>, %arg4: memref<1x128xf32, #tpu.memory_space<vmem>>, %arg5: memref<1x128xf32, #tpu.memory_space<vmem>>, %arg6: memref<1x256x128xbf16, #tpu.memory_space<vmem>>) attributes {dimension_semantics = [#tpu.dimension_semantics<parallel>, #tpu.dimension_semantics<parallel>], iteration_bounds = array<i64: 2, 1>, scalar_prefetch = 0 : i64, scratch_operands = 0 : i64, tpu.core_type = #tpu.core_type<tc>, window_params = [{transform_indices = @transform_0, window_bounds = array<i64: 1, 256, 128>}, {pipeline_mode = #tpu.pipeline_mode<synchronous>, transform_indices = @transform_1, window_bounds = array<i64: 128, 128>}, {pipeline_mode = #tpu.pipeline_mode<synchronous>, transform_indices = @transform_2, window_bounds = array<i64: 1, 128>}, {pipeline_mode = #tpu.pipeline_mode<synchronous>, transform_indices = @transform_3, window_bounds = array<i64: 1, 128>}, {transform_indices = @transform_4, window_bounds = array<i64: 1, 256, 128>}]} {
    %c0 = arith.constant 0 : index
    %c0_0 = arith.constant 0 : index
    %c0_1 = arith.constant 0 : index
    %0 = vector.load %arg2[%c0, %c0_0, %c0_1] : memref<1x256x128xbf16, #tpu.memory_space<vmem>>, vector<1x256x128xbf16>
    %1 = vector.shape_cast %0 : vector<1x256x128xbf16> to vector<256x128xbf16>
    %c0_2 = arith.constant 0 : index
    %c0_3 = arith.constant 0 : index
    %2 = vector.load %arg3[%c0_2, %c0_3] : memref<128x128xbf16, #tpu.memory_space<vmem>>, vector<128x128xbf16>
    %cst = arith.constant dense<0.000000e+00> : vector<256x128xf32>
    %3 = tpu.matmul %1, %2, %cst {dimension_numbers = #tpu.dot_dimension_numbers<[1], [0], [0], [1], [0, 0, 1, 1], [], []>} : vector<256x128xbf16>, vector<128x128xbf16>, vector<256x128xf32> -> vector<256x128xf32>
    %c0_4 = arith.constant 0 : index
    %c0_5 = arith.constant 0 : index
    %4 = vector.load %arg4[%c0_4, %c0_5] : memref<1x128xf32, #tpu.memory_space<vmem>>, vector<1x128xf32>
    %5 = vector.broadcast %4 : vector<1x128xf32> to vector<256x128xf32>
    %6 = arith.mulf %3, %5 : vector<256x128xf32>
    %c0_6 = arith.constant 0 : index
    %c0_7 = arith.constant 0 : index
    %7 = vector.load %arg5[%c0_6, %c0_7] : memref<1x128xf32, #tpu.memory_space<vmem>>, vector<1x128xf32>
    %8 = vector.broadcast %7 : vector<1x128xf32> to vector<256x128xf32>
    %9 = arith.addf %6, %8 : vector<256x128xf32>
    %cst_8 = arith.constant 0.000000e+00 : f32
    %10 = vector.broadcast %cst_8 : f32 to vector<256x128xf32>
    %11 = arith.subf %10, %9 : vector<256x128xf32>
    %12 = math.exp %11 : vector<256x128xf32>
    %cst_9 = arith.constant 1.000000e+00 : f32
    %13 = vector.broadcast %cst_9 : f32 to vector<256x128xf32>
    %14 = arith.addf %13, %12 : vector<256x128xf32>
    %15 = tpu.reciprocal %14 {approx = true} : vector<256x128xf32> -> vector<256x128xf32>
    %16 = arith.mulf %9, %15 : vector<256x128xf32>
    %17 = arith.truncf %16 : vector<256x128xf32> to vector<256x128xbf16>
    %c0_10 = arith.constant 0 : index
    %c0_11 = arith.constant 0 : index
    %c0_12 = arith.constant 0 : index
    %18 = vector.load %arg6[%c0_10, %c0_11, %c0_12] : memref<1x256x128xbf16, #tpu.memory_space<vmem>>, vector<1x256x128xbf16>
    %19 = vector.shape_cast %18 : vector<1x256x128xbf16> to vector<256x128xbf16>
    %20 = vector.shape_cast %17 : vector<256x128xbf16> to vector<1x256x128xbf16>
    tpu.vector_store %arg6[%c0_10, %c0_11, %c0_12], %20 {strides = array<i32>} : memref<1x256x128xbf16, #tpu.memory_space<vmem>>, vector<1x256x128xbf16>,
    return
  }
  func.func @transform_0(%arg0: i32, %arg1: i32) -> (i32, i32, i32) {
    %c0_i32 = arith.constant 0 : i32
    %c0_i32_0 = arith.constant 0 : i32
    return %arg0, %arg1, %c0_i32 : i32, i32, i32
  }
  func.func @transform_1(%arg0: i32, %arg1: i32) -> (i32, i32) {
    %c0_i32 = arith.constant 0 : i32
    %c0_i32_0 = arith.constant 0 : i32
    %c0_i32_1 = arith.constant 0 : i32
    return %c0_i32, %c0_i32_0 : i32, i32
  }
  func.func @transform_2(%arg0: i32, %arg1: i32) -> (i32, i32) {
    %c0_i32 = arith.constant 0 : i32
    %c0_i32_0 = arith.constant 0 : i32
    %c0_i32_1 = arith.constant 0 : i32
    return %c0_i32, %c0_i32_0 : i32, i32
  }
  func.func @transform_3(%arg0: i32, %arg1: i32) -> (i32, i32) {
    %c0_i32 = arith.constant 0 : i32
    %c0_i32_0 = arith.constant 0 : i32
    %c0_i32_1 = arith.constant 0 : i32
    return %c0_i32, %c0_i32_0 : i32, i32
  }
  func.func @transform_4(%arg0: i32, %arg1: i32) -> (i32, i32, i32) {
    %c0_i32 = arith.constant 0 : i32
    %c0_i32_0 = arith.constant 0 : i32
    return %arg0, %arg1, %c0_i32 : i32, i32, i32
  }
}

</mosaic_0001>

<llo_original>
// kernel: fused_conv3d.1
$region0: #{fused_conv3d.1}
  #allocation0 [shape = 'u32[]', space=smem, size = 0x4, offset = 0x4, fixed_abs, tag = 'smem constant byte address 0x4 - core index']
  #allocation1 [shape = 'u32[144,128]{1,0:T(1,128)}', space=vmem, size = 0x12000, scoped, tag = 'internal scratch']
  %s0 = inlined_call_operand.hbm [shape: bf16[2,256,128], index: 0, kind: input, shape index: {}]
  %s1 = inlined_call_operand.hbm [shape: bf16[128,128], index: 1, kind: input, shape index: {}]
  %s2 = inlined_call_operand.vmem [shape: f32[1,128], index: 2, kind: input, shape index: {}]
  %s3 = inlined_call_operand.vmem [shape: f32[1,128], index: 3, kind: input, shape index: {}]
  %s4 = inlined_call_operand.hbm [shape: bf16[2,256,128], index: 4, kind: output, shape index: {}]
  %s5 = sld [smem:[#allocation0]]
  $region57: #{fused_conv3d.1} parent=0
    _
  %s7 = ssub.s32 1, %s5
  %s8 = scalar_select 0, %s7, %s5
  $region1: #{fused_conv3d.1} parent=0
    #allocation2 [shape = 'u8[131072]{0}', space=vmem, size = 0x20000, scoped, tag = 'input window, operand 0']
    #allocation3 [shape = 's32[2]{0}', space=sflag, size = 0x8, scoped, tag = 'scoped memory for fused_conv3d.1']
    #allocation4 [shape = 's32[2]{0}', space=sflag, size = 0x8, scoped, tag = 'scoped memory for fused_conv3d.1']
    #allocation5 [shape = 'u8[32768]{0}', space=vmem, size = 0x8000, scoped, tag = 'input window, operand 1, single buffered']
    #allocation6 [shape = 's32[1]{0}', space=sflag, size = 0x4, scoped, tag = 'scoped memory for fused_conv3d.1']
    #allocation7 [shape = 'u8[131072]{0}', space=vmem, size = 0x20000, scoped, tag = 'output window, operand 0']
    %9 = vsyncpa [#allocation3], 0
    %s10 = scalar_lea.sflag [#allocation3], 1
    %11 = vsyncpa %s10, 0
    %12 = vsyncpa [#allocation6], 0
    %13 = vsyncpa [#allocation4], 0
    %s14 = scalar_lea.sflag [#allocation4], 1
    %15 = vsyncpa %s14, 0
    loop: start=0, step=1, limit=4
    $region2: #{fused_conv3d.1} parent=1 // loop_pre_header
      _
    $region3: #{fused_conv3d.1} parent=1 // loop_header
      %s17 = sphi 0, %s21
      %p18 = scmp.ge.s32.totalorder %s17, 4
      %s24 = sphi 0, %s36
      %s25 = sphi 0, %s32
      %s26 = sphi 0, %s24
      %s27 = sphi 0, %s25
      %s28 = sphi 0, %s26
      %s29 = sphi 0, %s27
      %s41 = sphi 0, %s43
      %s44 = sphi 0, %s41
      %s45 = sphi 0, %s44
      %s61 = sphi 0, %s45
      %s65 = sphi 0, %s65
      %s67 = sphi 0, %s65
      %s68 = sphi 0, %s67
      %s82 = sphi 0, %s68
      %s86 = sphi 0, %s86
      %s88 = sphi 0, %s86
      %s89 = sphi 0, %s88
      %s103 = sphi 0, %s89
      %s107 = sphi 0, %s107
      %s109 = sphi 0, %s107
      %s110 = sphi 0, %s109
      %s124 = sphi 0, %s110
      %s132 = sphi 0, %s134
      %s135 = sphi 0, %s132
      %s136 = sphi 0, %s135
      %s152 = sphi 0, %s136
    $region4: #{fused_conv3d.1} parent=1 // loop_header_branch
      %20 = sbr.rel (%p18) target = $region8
    $region5: #{fused_conv3d.1} parent=1 // loop_body
      %s22 = ssub.s32 %s17, 1
      %s23 = ssub.s32 %s17, 2
      %s30 = sadd.s32 1, %s25
      %p31 = scmp.ge.s32.totalorder %s30, 1
      %s32 = scalar_select %p31, 0, %s30
      %s33 = sadd.s32 1, %s24
      %s34 = scalar_select %p31, %s33, %s24
      %p35 = scmp.ge.s32.totalorder %s34, 2
      %s36 = scalar_select %p35, 0, %s34
      %s37 = ssub.s32 %s24, %s36
      %s38 = ssub.s32 %s25, %s32
      %s39 = sor.u32 %s37, %s38
      %p40 = scmp.eq.s32.totalorder %s39, 0
      %s42 = sadd.s32 %s41, 1
      %s43 = scalar_select %p40, %s41, %s42
      %p46 = pneg %p40
      %p47 = scmp.eq.s32.totalorder %s17, 1
      %p48 = por %p46, %p47
      %p49 = scmp.ne.s32.totalorder %s41, %s44
      %p50 = scmp.eq.s32.totalorder %s17, 0
      %p51 = por %p49, %p50
      %p52 = scmp.ne.s32.totalorder %s41, %s44
      %p53 = scmp.eq.s32.totalorder %s22, 1
      %p54 = por %p52, %p53
      %p55 = scmp.ne.s32.totalorder %s44, %s45
      %p56 = scmp.eq.s32.totalorder %s22, 0
      %p57 = por %p55, %p56
      %p58 = scmp.ne.s32.totalorder %s44, %s45
      %p59 = scmp.eq.s32.totalorder %s23, 1
      %p60 = por %p58, %p59
      %p62 = scmp.ne.s32.totalorder %s45, %s61
      %p63 = scmp.eq.s32.totalorder %s23, 0
      %p64 = por %p62, %p63
      %s66 = sadd.s32 %s65, 1
      %p69 = scmp.eq.s32.totalorder %s17, 1
      %p70 = scmp.ne.s32.totalorder %s65, %s67
      %p71 = scmp.eq.s32.totalorder %s17, 0
      %p72 = por %p70, %p71
      %p73 = scmp.ne.s32.totalorder %s65, %s67
      %p74 = scmp.eq.s32.totalorder %s22, 1
      %p75 = por %p73, %p74
      %p76 = scmp.ne.s32.totalorder %s67, %s68
      %p77 = scmp.eq.s32.totalorder %s22, 0
      %p78 = por %p76, %p77
      %p79 = scmp.ne.s32.totalorder %s67, %s68
      %p80 = scmp.eq.s32.totalorder %s23, 1
      %p81 = por %p79, %p80
      %p83 = scmp.ne.s32.totalorder %s68, %s82
      %p84 = scmp.eq.s32.totalorder %s23, 0
      %p85 = por %p83, %p84
      %s87 = sadd.s32 %s86, 1
      %p90 = scmp.eq.s32.totalorder %s17, 1
      %p91 = scmp.ne.s32.totalorder %s86, %s88
      %p92 = scmp.eq.s32.totalorder %s17, 0
      %p93 = por %p91, %p92
      %p94 = scmp.ne.s32.totalorder %s86, %s88
      %p95 = scmp.eq.s32.totalorder %s22, 1
      %p96 = por %p94, %p95
      %p97 = scmp.ne.s32.totalorder %s88, %s89
      %p98 = scmp.eq.s32.totalorder %s22, 0
      %p99 = por %p97, %p98
      %p100 = scmp.ne.s32.totalorder %s88, %s89
      %p101 = scmp.eq.s32.totalorder %s23, 1
      %p102 = por %p100, %p101
      %p104 = scmp.ne.s32.totalorder %s89, %s103
      %p105 = scmp.eq.s32.totalorder %s23, 0
      %p106 = por %p104, %p105
      %s108 = sadd.s32 %s107, 1
      %p111 = scmp.eq.s32.totalorder %s17, 1
      %p112 = scmp.ne.s32.totalorder %s107, %s109
      %p113 = scmp.eq.s32.totalorder %s17, 0
      %p114 = por %p112, %p113
      %p115 = scmp.ne.s32.totalorder %s107, %s109
      %p116 = scmp.eq.s32.totalorder %s22, 1
      %p117 = por %p115, %p116
      %p118 = scmp.ne.s32.totalorder %s109, %s110
      %p119 = scmp.eq.s32.totalorder %s22, 0
      %p120 = por %p118, %p119
      %p121 = scmp.ne.s32.totalorder %s109, %s110
      %p122 = scmp.eq.s32.totalorder %s23, 1
      %p123 = por %p121, %p122
      %p125 = scmp.ne.s32.totalorder %s110, %s124
      %p126 = scmp.eq.s32.totalorder %s23, 0
      %p127 = por %p125, %p126
      %s128 = ssub.s32 %s24, %s36
      %s129 = ssub.s32 %s25, %s32
      %s130 = sor.u32 %s128, %s129
      %p131 = scmp.eq.s32.totalorder %s130, 0
      %s133 = sadd.s32 %s132, 1
      %s134 = scalar_select %p131, %s132, %s133
      %p137 = pneg %p131
      %p138 = scmp.eq.s32.totalorder %s17, 1
      %p139 = por %p137, %p138
      %p140 = scmp.ne.s32.totalorder %s132, %s135
      %p141 = scmp.eq.s32.totalorder %s17, 0
      %p142 = por %p140, %p141
      %p143 = scmp.ne.s32.totalorder %s132, %s135
      %p144 = scmp.eq.s32.totalorder %s22, 1
      %p145 = por %p143, %p144
      %p146 = scmp.ne.s32.totalorder %s135, %s136
      %p147 = scmp.eq.s32.totalorder %s22, 0
      %p148 = por %p146, %p147
      %p149 = scmp.ne.s32.totalorder %s135, %s136
      %p150 = scmp.eq.s32.totalorder %s23, 1
      %p151 = por %p149, %p150
      %p153 = scmp.ne.s32.totalorder %s136, %s152
      %p154 = scmp.eq.s32.totalorder %s23, 0
      %p155 = por %p153, %p154
      %p156 = scmp.le.s32.totalorder 1, %s17
      %p157 = scmp.lt.s32.totalorder %s17, 3
      %p158 = pnand %p156, %p157
      %p159 = pneg %p158
      // Predicated region
      $region9: #{fused_conv3d.1} parent=5 // pred_check
        _
      $region10: #{fused_conv3d.1} parent=5 // pred_check_branch
        %161 = sbr.rel (%p158) target = $region12
      $region11: #{fused_conv3d.1} parent=5 // pred_region
        %s162 = ssub.s32 %s17, 1
        // Predicated region
        $region13: #{fused_conv3d.1} parent=11 // pred_check
          %p163 = pneg %p78
        $region14: #{fused_conv3d.1} parent=11 // pred_check_branch
          %165 = sbr.rel (%p163) target = $region16
        $region15: #{fused_conv3d.1} parent=11 // pred_region
          %s167 = ssub.s32 1024, 1024
          %168 = vsyncadd [#allocation6], %s167
          %s169 = sshll.u32 [#allocation5], 4
          %s170 = int_to_ptr.vmem [resolvable:$true] %s169
          %175 = dma.hbm_to_vmem [thread:$0]  %s1, 1024, %s170, [#allocation6], 64, 64, 4
        $region16: #{fused_conv3d.1} parent=11 // pred_fallthru
          _
        // Predicated region
        $region17: #{fused_conv3d.1} parent=11 // pred_check
          %p176 = pneg %p99
        $region18: #{fused_conv3d.1} parent=11 // pred_check_branch
          %178 = sbr.rel (%p176) target = $region20
        $region19: #{fused_conv3d.1} parent=11 // pred_region
          _
        $region20: #{fused_conv3d.1} parent=11 // pred_fallthru
          _
        // Predicated region
        $region21: #{fused_conv3d.1} parent=11 // pred_check
          %p179 = pneg %p120
        $region22: #{fused_conv3d.1} parent=11 // pred_check_branch
          %181 = sbr.rel (%p179) target = $region24
        $region23: #{fused_conv3d.1} parent=11 // pred_region
          _
        $region24: #{fused_conv3d.1} parent=11 // pred_fallthru
          _
      $region12: #{fused_conv3d.1} parent=5 // pred_fallthru
        _
      %p182 = scmp.lt.s32.totalorder %s17, 2
      // Predicated region
      $region25: #{fused_conv3d.1} parent=5 // pred_check
        %p183 = pneg %p182
      $region26: #{fused_conv3d.1} parent=5 // pred_check_branch
        %185 = sbr.rel (%p183) target = $region28
      $region27: #{fused_conv3d.1} parent=5 // pred_region
        // Predicated region
        $region29: #{fused_conv3d.1} parent=27 // pred_check
          %p186 = pneg %p51
        $region30: #{fused_conv3d.1} parent=27 // pred_check_branch
          %188 = sbr.rel (%p186) target = $region32
        $region31: #{fused_conv3d.1} parent=27 // pred_region
          %s189 = sand.u32 %s41, 1
          %s190 = scalar_lea.sflag [#allocation3], %s189
          %s191 = sand.u32 %s41, 1
          %s192 = smul.addr %s191, 128
          %s193 = scalar_lea.vmem [#allocation2], %s192
          %s194 = smul.u32 32, %s25
          %s196 = ssub.s32 2048, 2048
          %197 = vsyncadd %s190, %s196
          %s198 = smul.addr %s24, 32
          %s199 = sadd.s32 %s194, %s198
          %s200 = smul.addr %s199, 64
          %s201 = scalar_lea.hbm %s0, %s200
          %s202 = sshll.u32 %s193, 4
          %s203 = int_to_ptr.vmem [resolvable:$true] %s202
          %208 = dma.hbm_to_vmem [thread:$0]  %s201, 2048, %s203, %s190, 64, 64, 4
        $region32: #{fused_conv3d.1} parent=27 // pred_fallthru
          _
      $region28: #{fused_conv3d.1} parent=5 // pred_fallthru
        _
      %p209 = scmp.le.s32.totalorder 1, %s17
      %p210 = scmp.lt.s32.totalorder %s17, 3
      %p211 = pnand %p209, %p210
      %p212 = pneg %p211
      // Predicated region
      $region33: #{fused_conv3d.1} parent=5 // pred_check
        _
      $region34: #{fused_conv3d.1} parent=5 // pred_check_branch
        %214 = sbr.rel (%p211) target = $region36
      $region35: #{fused_conv3d.1} parent=5 // pred_region
        %s215 = ssub.s32 %s17, 1
        %s216 = sand.u32 %s44, 1
        %s217 = scalar_lea.sflag [#allocation3], %s216
        %s218 = sand.u32 %s44, 1
        %s219 = smul.addr %s218, 128
        %s220 = scalar_lea.vmem [#allocation2], %s219
        // Predicated region
        $region37: #{fused_conv3d.1} parent=35 // pred_check
          %p221 = pneg %p57
        $region38: #{fused_conv3d.1} parent=35 // pred_check_branch
          %223 = sbr.rel (%p221) target = $region40
        $region39: #{fused_conv3d.1} parent=35 // pred_region
          %224 = dma.done %s217, 2048
        $region40: #{fused_conv3d.1} parent=35 // pred_fallthru
          _
        // Predicated region
        $region41: #{fused_conv3d.1} parent=35 // pred_check
          %p225 = pneg %p78
        $region42: #{fused_conv3d.1} parent=35 // pred_check_branch
          %227 = sbr.rel (%p225) target = $region44
        $region43: #{fused_conv3d.1} parent=35 // pred_region
          %228 = dma.done [#allocation6], 1024
        $region44: #{fused_conv3d.1} parent=35 // pred_fallthru
          _
        %s229 = sand.u32 %s44, 1
        %s230 = scalar_lea.sflag [#allocation3], %s229
        %s231 = sand.u32 %s44, 1
        %s232 = smul.addr %s231, 128
        %s233 = scalar_lea.vmem [#allocation2], %s232
        %p234 = pneg %p57
        %p235 = pneg %p54
        %p236 = pneg %p78
        %p237 = pneg %p75
        %p238 = pneg %p99
        %p239 = pneg %p96
        %p240 = pneg %p120
        %p241 = pneg %p117
        %p242 = pneg %p148
        %p243 = pneg %p145
        %s244 = sand.u32 %s135, 1
        %s245 = scalar_lea.sflag [#allocation4], %s244
        %s246 = sand.u32 %s135, 1
        %s247 = smul.addr %s246, 128
        %s248 = scalar_lea.vmem [#allocation7], %s247
        %s249 = smul.u32 32, %s27
        %s250 = smul.u32 32, %s27
        %v252 = vld [vmem:[%s220] sm:$0xf]
        %v253 = vld [vmem:[%s220 + $0x4] sm:$0xf]
        %v254 = vld [vmem:[%s220 + $0x8] sm:$0xf]
        %v255 = vld [vmem:[%s220 + $0xc] sm:$0xf]
        %v256 = vld [vmem:[%s220 + $0x10] sm:$0xf]
        %v257 = vld [vmem:[%s220 + $0x14] sm:$0xf]
        %v258 = vld [vmem:[%s220 + $0x18] sm:$0xf]
        %v259 = vld [vmem:[%s220 + $0x1c] sm:$0xf]
        %v260 = vld [vmem:[%s220 + $0x20] sm:$0xf]
        %v261 = vld [vmem:[%s220 + $0x24] sm:$0xf]
        %v262 = vld [vmem:[%s220 + $0x28] sm:$0xf]
        %v263 = vld [vmem:[%s220 + $0x2c] sm:$0xf]
        %v264 = vld [vmem:[%s220 + $0x30] sm:$0xf]
        %v265 = vld [vmem:[%s220 + $0x34] sm:$0xf]
        %v266 = vld [vmem:[%s220 + $0x38] sm:$0xf]
        %v267 = vld [vmem:[%s220 + $0x3c] sm:$0xf]
        %v268 = vld [vmem:[%s220 + $0x40] sm:$0xf]
        %v269 = vld [vmem:[%s220 + $0x44] sm:$0xf]
        %v270 = vld [vmem:[%s220 + $0x48] sm:$0xf]
        %v271 = vld [vmem:[%s220 + $0x4c] sm:$0xf]
        %v272 = vld [vmem:[%s220 + $0x50] sm:$0xf]
        %v273 = vld [vmem:[%s220 + $0x54] sm:$0xf]
        %v274 = vld [vmem:[%s220 + $0x58] sm:$0xf]
        %v275 = vld [vmem:[%s220 + $0x5c] sm:$0xf]
        %v276 = vld [vmem:[%s220 + $0x60] sm:$0xf]
        %v277 = vld [vmem:[%s220 + $0x64] sm:$0xf]
        %v278 = vld [vmem:[%s220 + $0x68] sm:$0xf]
        %v279 = vld [vmem:[%s220 + $0x6c] sm:$0xf]
        %v280 = vld [vmem:[%s220 + $0x70] sm:$0xf]
        %v281 = vld [vmem:[%s220 + $0x74] sm:$0xf]
        %v282 = vld [vmem:[%s220 + $0x78] sm:$0xf]
        %v283 = vld [vmem:[%s220 + $0x7c] sm:$0xf]
        %v284 = vld [vmem:[#allocation5] sm:$0xf]
        %v285 = vld [vmem:[#allocation5 + $0x4] sm:$0xf]
        %v286 = vld [vmem:[#allocation5 + $0x8] sm:$0xf]
        %v287 = vld [vmem:[#allocation5 + $0xc] sm:$0xf]
        %v288 = vld [vmem:[#allocation5 + $0x10] sm:$0xf]
        %v289 = vld [vmem:[#allocation5 + $0x14] sm:$0xf]
        %v290 = vld [vmem:[#allocation5 + $0x18] sm:$0xf]
        %v291 = vld [vmem:[#allocation5 + $0x1c] sm:$0xf]
        %v292 = vld [vmem:[#allocation5 + $0x20] sm:$0xf]
        %v293 = vld [vmem:[#allocation5 + $0x24] sm:$0xf]
        %v294 = vld [vmem:[#allocation5 + $0x28] sm:$0xf]
        %v295 = vld [vmem:[#allocation5 + $0x2c] sm:$0xf]
        %v296 = vld [vmem:[#allocation5 + $0x30] sm:$0xf]
        %v297 = vld [vmem:[#allocation5 + $0x34] sm:$0xf]
        %v298 = vld [vmem:[#allocation5 + $0x38] sm:$0xf]
        %v299 = vld [vmem:[#allocation5 + $0x3c] sm:$0xf]
        %v332 = vunpack.c.l.b16 %v252
        %v333 = vunpack.c.l.b16 %v253
        %v334 = vunpack.c.l.b16 %v254
        %v335 = vunpack.c.l.b16 %v255
        %v336 = vunpack.c.l.b16 %v256
        %v337 = vunpack.c.l.b16 %v257
        %v338 = vunpack.c.l.b16 %v258
        %v339 = vunpack.c.l.b16 %v259
        %v340 = vunpack.c.l.b16 %v260
        %v341 = vunpack.c.l.b16 %v261
        %v342 = vunpack.c.l.b16 %v262
        %v343 = vunpack.c.l.b16 %v263
        %v344 = vunpack.c.l.b16 %v264
        %v345 = vunpack.c.l.b16 %v265
        %v346 = vunpack.c.l.b16 %v266
        %v347 = vunpack.c.l.b16 %v267
        %v348 = vunpack.c.l.b16 %v268
        %v349 = vunpack.c.l.b16 %v269
        %v350 = vunpack.c.l.b16 %v270
        %v351 = vunpack.c.l.b16 %v271
        %v352 = vunpack.c.l.b16 %v272
        %v353 = vunpack.c.l.b16 %v273
        %v354 = vunpack.c.l.b16 %v274
        %v355 = vunpack.c.l.b16 %v275
        %v356 = vunpack.c.l.b16 %v276
        %v357 = vunpack.c.l.b16 %v277
        %v358 = vunpack.c.l.b16 %v278
        %v359 = vunpack.c.l.b16 %v279
        %v360 = vunpack.c.l.b16 %v280
        %v361 = vunpack.c.l.b16 %v281
        %v362 = vunpack.c.l.b16 %v282
        %v363 = vunpack.c.l.b16 %v283
        %v364 = vpack.c.b16 %v333, %v332
        %v365 = vpack.c.b16 %v335, %v334
        %v366 = vpack.c.b16 %v337, %v336
        %v367 = vpack.c.b16 %v339, %v338
        %v368 = vpack.c.b16 %v341, %v340
        %v369 = vpack.c.b16 %v343, %v342
        %v370 = vpack.c.b16 %v345, %v344
        %v371 = vpack.c.b16 %v347, %v346
        %v372 = vpack.c.b16 %v349, %v348
        %v373 = vpack.c.b16 %v351, %v350
        %v374 = vpack.c.b16 %v353, %v352
        %v375 = vpack.c.b16 %v355, %v354
        %v376 = vpack.c.b16 %v357, %v356
        %v377 = vpack.c.b16 %v359, %v358
        %v378 = vpack.c.b16 %v361, %v360
        %v379 = vpack.c.b16 %v363, %v362
        %v412 = vunpack.c.l.b16 %v284
        %v413 = vunpack.c.l.b16 %v285
        %v414 = vunpack.c.l.b16 %v286
        %v415 = vunpack.c.l.b16 %v287
        %v416 = vunpack.c.l.b16 %v288
        %v417 = vunpack.c.l.b16 %v289
        %v418 = vunpack.c.l.b16 %v290
        %v419 = vunpack.c.l.b16 %v291
        %v420 = vunpack.c.l.b16 %v292
        %v421 = vunpack.c.l.b16 %v293
        %v422 = vunpack.c.l.b16 %v294
        %v423 = vunpack.c.l.b16 %v295
        %v424 = vunpack.c.l.b16 %v296
        %v425 = vunpack.c.l.b16 %v297
        %v426 = vunpack.c.l.b16 %v298
        %v427 = vunpack.c.l.b16 %v299
        %v428 = vpack.c.b16 %v413, %v412
        %v429 = vpack.c.b16 %v415, %v414
        %v430 = vpack.c.b16 %v417, %v416
        %v431 = vpack.c.b16 %v419, %v418
        %v432 = vpack.c.b16 %v421, %v420
        %v433 = vpack.c.b16 %v423, %v422
        %v434 = vpack.c.b16 %v425, %v424
        %v435 = vpack.c.b16 %v427, %v426
        %444 = vmatprep.subr.bf16.mxu0 0
        %445 = vmatpush1.bf16.msra.mxu0 %v428
        %446 = vmatprep.subr.bf16.mxu0 0
        %447 = vmatpush1.bf16.msra.mxu0 %v429
        %448 = vmatprep.subr.bf16.mxu0 0
        %449 = vmatpush1.bf16.msra.mxu0 %v430
        %450 = vmatprep.subr.bf16.mxu0 0
        %451 = vmatpush1.bf16.msra.mxu0 %v431
        %452 = vmatprep.subr.bf16.mxu0 0
        %453 = vmatpush1.bf16.msra.mxu0 %v432
        %454 = vmatprep.subr.bf16.mxu0 0
        %455 = vmatpush1.bf16.msra.mxu0 %v433
        %456 = vmatprep.subr.bf16.mxu0 0
        %457 = vmatpush1.bf16.msra.mxu0 %v434
        %458 = vmatprep.subr.bf16.mxu0 0
        %459 = vmatpush1.bf16.msra.mxu0 %v435
        %460 = vmatprep.subr.bf16.mxu0 0
        %461 = vmatpush1.bf16.msra.mxu0 0
        %462 = vmatprep.subr.bf16.mxu0 0
        %463 = vmatpush1.bf16.msra.mxu0 0
        %464 = vmatprep.subr.bf16.mxu0 0
        %465 = vmatpush1.bf16.msra.mxu0 0
        %466 = vmatprep.subr.bf16.mxu0 0
        %467 = vmatpush1.bf16.msra.mxu0 0
        %468 = vmatprep.subr.bf16.mxu0 0
        %469 = vmatpush1.bf16.msra.mxu0 0
        %470 = vmatprep.subr.bf16.mxu0 0
        %471 = vmatpush1.bf16.msra.mxu0 0
        %472 = vmatprep.subr.bf16.mxu0 0
        %473 = vmatpush1.bf16.msra.mxu0 0
        %474 = vmatprep.subr.bf16.mxu0 0
        %475 = vmatpush1.bf16.msra.mxu0 0
        %476 = vmatprep.mubr.bf16.mxu0 0
        %477 = vmatmul.mubr.bf16.gmra.mrb[0].mxu0 %v364
        %v478 = vpop.f32.mrb[0].mxu0
        %v479 = vadd.f32 0.0, %v478
        %v480 = vpop.f32.mrb[0].mxu0
        %v481 = vpop.f32.mrb[0].mxu0
        %v482 = vadd.f32 0.0, %v481
        %v483 = vpop.f32.mrb[0].mxu0
        %484 = vmatprep.mubr.bf16.mxu0 0
        %485 = vmatmul.mubr.bf16.gmra.mrb[0].mxu0 %v365
        %v486 = vpop.f32.mrb[0].mxu0
        %v487 = vadd.f32 0.0, %v486
        %v488 = vpop.f32.mrb[0].mxu0
        %v489 = vpop.f32.mrb[0].mxu0
        %v490 = vadd.f32 0.0, %v489
        %v491 = vpop.f32.mrb[0].mxu0
        %492 = vmatprep.mubr.bf16.mxu0 0
        %493 = vmatmul.mubr.bf16.gmra.mrb[0].mxu0 %v366
        %v494 = vpop.f32.mrb[0].mxu0
        %v495 = vadd.f32 0.0, %v494
        %v496 = vpop.f32.mrb[0].mxu0
        %v497 = vpop.f32.mrb[0].mxu0
        %v498 = vadd.f32 0.0, %v497
        %v499 = vpop.f32.mrb[0].mxu0
        %500 = vmatprep.mubr.bf16.mxu0 0
        %501 = vmatmul.mubr.bf16.gmra.mrb[0].mxu0 %v367
        %v502 = vpop.f32.mrb[0].mxu0
        %v503 = vadd.f32 0.0, %v502
        %v504 = vpop.f32.mrb[0].mxu0
        %v505 = vpop.f32.mrb[0].mxu0
        %v506 = vadd.f32 0.0, %v505
        %v507 = vpop.f32.mrb[0].mxu0
        %508 = vmatprep.mubr.bf16.mxu0 0
        %509 = vmatmul.mubr.bf16.gmra.mrb[0].mxu0 %v368
        %v510 = vpop.f32.mrb[0].mxu0
        %v511 = vadd.f32 0.0, %v510
        %v512 = vpop.f32.mrb[0].mxu0
        %v513 = vpop.f32.mrb[0].mxu0
        %v514 = vadd.f32 0.0, %v513
        %v515 = vpop.f32.mrb[0].mxu0
        %516 = vmatprep.mubr.bf16.mxu0 0
        %517 = vmatmul.mubr.bf16.gmra.mrb[0].mxu0 %v369
        %v518 = vpop.f32.mrb[0].mxu0
        %v519 = vadd.f32 0.0, %v518
        %v520 = vpop.f32.mrb[0].mxu0
        %v521 = vpop.f32.mrb[0].mxu0
        %v522 = vadd.f32 0.0, %v521
        %v523 = vpop.f32.mrb[0].mxu0
        %524 = vmatprep.mubr.bf16.mxu0 0
        %525 = vmatmul.mubr.bf16.gmra.mrb[0].mxu0 %v370
        %v526 = vpop.f32.mrb[0].mxu0
        %v527 = vadd.f32 0.0, %v526
        %v528 = vpop.f32.mrb[0].mxu0
        %v529 = vpop.f32.mrb[0].mxu0
        %v530 = vadd.f32 0.0, %v529
        %v531 = vpop.f32.mrb[0].mxu0
        %532 = vmatprep.mubr.bf16.mxu0 0
        %533 = vmatmul.mubr.bf16.gmra.mrb[0].mxu0 %v371
        %v534 = vpop.f32.mrb[0].mxu0
        %v535 = vadd.f32 0.0, %v534
        %v536 = vpop.f32.mrb[0].mxu0
        %v537 = vpop.f32.mrb[0].mxu0
        %v538 = vadd.f32 0.0, %v537
        %v539 = vpop.f32.mrb[0].mxu0
        %540 = vmatprep.mubr.bf16.mxu0 0
        %541 = vmatmul.mubr.bf16.gmra.mrb[0].mxu0 %v372
        %v542 = vpop.f32.mrb[0].mxu0
        %v543 = vadd.f32 0.0, %v542
        %v544 = vpop.f32.mrb[0].mxu0
        %v545 = vpop.f32.mrb[0].mxu0
        %v546 = vadd.f32 0.0, %v545
        %v547 = vpop.f32.mrb[0].mxu0
        %548 = vmatprep.mubr.bf16.mxu0 0
        %549 = vmatmul.mubr.bf16.gmra.mrb[0].mxu0 %v373
        %v550 = vpop.f32.mrb[0].mxu0
        %v551 = vadd.f32 0.0, %v550
        %v552 = vpop.f32.mrb[0].mxu0
        %v553 = vpop.f32.mrb[0].mxu0
        %v554 = vadd.f32 0.0, %v553
        %v555 = vpop.f32.mrb[0].mxu0
        %556 = vmatprep.mubr.bf16.mxu0 0
        %557 = vmatmul.mubr.bf16.gmra.mrb[0].mxu0 %v374
        %v558 = vpop.f32.mrb[0].mxu0
        %v559 = vadd.f32 0.0, %v558
        %v560 = vpop.f32.mrb[0].mxu0
        %v561 = vpop.f32.mrb[0].mxu0
        %v562 = vadd.f32 0.0, %v561
        %v563 = vpop.f32.mrb[0].mxu0
        %564 = vmatprep.mubr.bf16.mxu0 0
        %565 = vmatmul.mubr.bf16.gmra.mrb[0].mxu0 %v375
        %v566 = vpop.f32.mrb[0].mxu0
        %v567 = vadd.f32 0.0, %v566
        %v568 = vpop.f32.mrb[0].mxu0
        %v569 = vpop.f32.mrb[0].mxu0
        %v570 = vadd.f32 0.0, %v569
        %v571 = vpop.f32.mrb[0].mxu0
        %572 = vmatprep.mubr.bf16.mxu0 0
        %573 = vmatmul.mubr.bf16.gmra.mrb[0].mxu0 %v376
        %v574 = vpop.f32.mrb[0].mxu0
        %v575 = vadd.f32 0.0, %v574
        %v576 = vpop.f32.mrb[0].mxu0
        %v577 = vpop.f32.mrb[0].mxu0
        %v578 = vadd.f32 0.0, %v577
        %v579 = vpop.f32.mrb[0].mxu0
        %580 = vmatprep.mubr.bf16.mxu0 0
        %581 = vmatmul.mubr.bf16.gmra.mrb[0].mxu0 %v377
        %v582 = vpop.f32.mrb[0].mxu0
        %v583 = vadd.f32 0.0, %v582
        %v584 = vpop.f32.mrb[0].mxu0
        %v585 = vpop.f32.mrb[0].mxu0
        %v586 = vadd.f32 0.0, %v585
        %v587 = vpop.f32.mrb[0].mxu0
        %588 = vmatprep.mubr.bf16.mxu0 0
        %589 = vmatmul.mubr.bf16.gmra.mrb[0].mxu0 %v378
        %v590 = vpop.f32.mrb[0].mxu0
        %v591 = vadd.f32 0.0, %v590
        %v592 = vpop.f32.mrb[0].mxu0
        %v593 = vpop.f32.mrb[0].mxu0
        %v594 = vadd.f32 0.0, %v593
        %v595 = vpop.f32.mrb[0].mxu0
        %596 = vmatprep.mubr.bf16.mxu0 0
        %597 = vmatmul.mubr.bf16.gmra.mrb[0].mxu0 %v379
        %v598 = vpop.f32.mrb[0].mxu0
        %v599 = vadd.f32 0.0, %v598
        %v600 = vpop.f32.mrb[0].mxu0
        %v601 = vpop.f32.mrb[0].mxu0
        %v602 = vadd.f32 0.0, %v601
        %v603 = vpop.f32.mrb[0].mxu0
        %604 = vdwg.mxu0
        %v605 = vld [vmem:[%s2] sm:$0x1]
        %v607 = vlaneseq
        %v608 = vshrl.u32 %v607, 7
        %v609 = vsub.s32 0, %v608
        %v610 = vrot.slane %v605, %v609
        %v612 = vmul.f32 %v479, %v610
        %v613 = vmul.f32 %v482, %v610
        %v614 = vmul.f32 %v487, %v610
        %v615 = vmul.f32 %v490, %v610
        %v616 = vmul.f32 %v495, %v610
        %v617 = vmul.f32 %v498, %v610
        %v618 = vmul.f32 %v503, %v610
        %v619 = vmul.f32 %v506, %v610
        %v620 = vmul.f32 %v511, %v610
        %v621 = vmul.f32 %v514, %v610
        %v622 = vmul.f32 %v519, %v610
        %v623 = vmul.f32 %v522, %v610
        %v624 = vmul.f32 %v527, %v610
        %v625 = vmul.f32 %v530, %v610
        %v626 = vmul.f32 %v535, %v610
        %v627 = vmul.f32 %v538, %v610
        %v628 = vmul.f32 %v543, %v610
        %v629 = vmul.f32 %v546, %v610
        %v630 = vmul.f32 %v551, %v610
        %v631 = vmul.f32 %v554, %v610
        %v632 = vmul.f32 %v559, %v610
        %v633 = vmul.f32 %v562, %v610
        %v634 = vmul.f32 %v567, %v610
        %v635 = vmul.f32 %v570, %v610
        %v636 = vmul.f32 %v575, %v610
        %v637 = vmul.f32 %v578, %v610
        %v638 = vmul.f32 %v583, %v610
        %v639 = vmul.f32 %v586, %v610
        %v640 = vmul.f32 %v591, %v610
        %v641 = vmul.f32 %v594, %v610
        %v642 = vmul.f32 %v599, %v610
        %v643 = vmul.f32 %v602, %v610
        %v644 = vld [vmem:[%s3] sm:$0x1]
        %v646 = vlaneseq
        %v647 = vshrl.u32 %v646, 7
        %v648 = vsub.s32 0, %v647
        %v649 = vrot.slane %v644, %v648
        %v651 = vadd.f32 %v612, %v649
        %v652 = vadd.f32 %v613, %v649
        %v653 = vadd.f32 %v614, %v649
        %v654 = vadd.f32 %v615, %v649
        %v655 = vadd.f32 %v616, %v649
        %v656 = vadd.f32 %v617, %v649
        %v657 = vadd.f32 %v618, %v649
        %v658 = vadd.f32 %v619, %v649
        %v659 = vadd.f32 %v620, %v649
        %v660 = vadd.f32 %v621, %v649
        %v661 = vadd.f32 %v622, %v649
        %v662 = vadd.f32 %v623, %v649
        %v663 = vadd.f32 %v624, %v649
        %v664 = vadd.f32 %v625, %v649
        %v665 = vadd.f32 %v626, %v649
        %v666 = vadd.f32 %v627, %v649
        %v667 = vadd.f32 %v628, %v649
        %v668 = vadd.f32 %v629, %v649
        %v669 = vadd.f32 %v630, %v649
        %v670 = vadd.f32 %v631, %v649
        %v671 = vadd.f32 %v632, %v649
        %v672 = vadd.f32 %v633, %v649
        %v673 = vadd.f32 %v634, %v649
        %v674 = vadd.f32 %v635, %v649
        %v675 = vadd.f32 %v636, %v649
        %v676 = vadd.f32 %v637, %v649
        %v677 = vadd.f32 %v638, %v649
        %v678 = vadd.f32 %v639, %v649
        %v679 = vadd.f32 %v640, %v649
        %v680 = vadd.f32 %v641, %v649
        %v681 = vadd.f32 %v642, %v649
        %v682 = vadd.f32 %v643, %v649
        %v683 = vsub.f32 0.0, %v651
        %v684 = vsub.f32 0.0, %v652
        %v685 = vsub.f32 0.0, %v653
        %v686 = vsub.f32 0.0, %v654
        %v687 = vsub.f32 0.0, %v655
        %v688 = vsub.f32 0.0, %v656
        %v689 = vsub.f32 0.0, %v657
        %v690 = vsub.f32 0.0, %v658
        %v691 = vsub.f32 0.0, %v659
        %v692 = vsub.f32 0.0, %v660
        %v693 = vsub.f32 0.0, %v661
        %v694 = vsub.f32 0.0, %v662
        %v695 = vsub.f32 0.0, %v663
        %v696 = vsub.f32 0.0, %v664
        %v697 = vsub.f32 0.0, %v665
        %v698 = vsub.f32 0.0, %v666
        %v699 = vsub.f32 0.0, %v667
        %v700 = vsub.f32 0.0, %v668
        %v701 = vsub.f32 0.0, %v669
        %v702 = vsub.f32 0.0, %v670
        %v703 = vsub.f32 0.0, %v671
        %v704 = vsub.f32 0.0, %v672
        %v705 = vsub.f32 0.0, %v673
        %v706 = vsub.f32 0.0, %v674
        %v707 = vsub.f32 0.0, %v675
        %v708 = vsub.f32 0.0, %v676
        %v709 = vsub.f32 0.0, %v677
        %v710 = vsub.f32 0.0, %v678
        %v711 = vsub.f32 0.0, %v679
        %v712 = vsub.f32 0.0, %v680
        %v713 = vsub.f32 0.0, %v681
        %v714 = vsub.f32 0.0, %v682
        %v715 = vmul.f32 %v683, 1.442695
        %v716 = vpow.pop %v715
        %v717 = vmul.f32 %v684, 1.442695
        %v718 = vpow.pop %v717
        %v719 = vmul.f32 %v685, 1.442695
        %v720 = vpow.pop %v719
        %v721 = vmul.f32 %v686, 1.442695
        %v722 = vpow.pop %v721
        %v723 = vmul.f32 %v687, 1.442695
        %v724 = vpow.pop %v723
        %v725 = vmul.f32 %v688, 1.442695
        %v726 = vpow.pop %v725
        %v727 = vmul.f32 %v689, 1.442695
        %v728 = vpow.pop %v727
        %v729 = vmul.f32 %v690, 1.442695
        %v730 = vpow.pop %v729
        %v731 = vmul.f32 %v691, 1.442695
        %v732 = vpow.pop %v731
        %v733 = vmul.f32 %v692, 1.442695
        %v734 = vpow.pop %v733
        %v735 = vmul.f32 %v693, 1.442695
        %v736 = vpow.pop %v735
        %v737 = vmul.f32 %v694, 1.442695
        %v738 = vpow.pop %v737
        %v739 = vmul.f32 %v695, 1.442695
        %v740 = vpow.pop %v739
        %v741 = vmul.f32 %v696, 1.442695
        %v742 = vpow.pop %v741
        %v743 = vmul.f32 %v697, 1.442695
        %v744 = vpow.pop %v743
        %v745 = vmul.f32 %v698, 1.442695
        %v746 = vpow.pop %v745
        %v747 = vmul.f32 %v699, 1.442695
        %v748 = vpow.pop %v747
        %v749 = vmul.f32 %v700, 1.442695
        %v750 = vpow.pop %v749
        %v751 = vmul.f32 %v701, 1.442695
        %v752 = vpow.pop %v751
        %v753 = vmul.f32 %v702, 1.442695
        %v754 = vpow.pop %v753
        %v755 = vmul.f32 %v703, 1.442695
        %v756 = vpow.pop %v755
        %v757 = vmul.f32 %v704, 1.442695
        %v758 = vpow.pop %v757
        %v759 = vmul.f32 %v705, 1.442695
        %v760 = vpow.pop %v759
        %v761 = vmul.f32 %v706, 1.442695
        %v762 = vpow.pop %v761
        %v763 = vmul.f32 %v707, 1.442695
        %v764 = vpow.pop %v763
        %v765 = vmul.f32 %v708, 1.442695
        %v766 = vpow.pop %v765
        %v767 = vmul.f32 %v709, 1.442695
        %v768 = vpow.pop %v767
        %v769 = vmul.f32 %v710, 1.442695
        %v770 = vpow.pop %v769
        %v771 = vmul.f32 %v711, 1.442695
        %v772 = vpow.pop %v771
        %v773 = vmul.f32 %v712, 1.442695
        %v774 = vpow.pop %v773
        %v775 = vmul.f32 %v713, 1.442695
        %v776 = vpow.pop %v775
        %v777 = vmul.f32 %v714, 1.442695
        %v778 = vpow.pop %v777
        %v779 = vadd.f32 %v716, 1.0
        %v780 = vadd.f32 %v718, 1.0
        %v781 = vadd.f32 %v720, 1.0
        %v782 = vadd.f32 %v722, 1.0
        %v783 = vadd.f32 %v724, 1.0
        %v784 = vadd.f32 %v726, 1.0
        %v785 = vadd.f32 %v728, 1.0
        %v786 = vadd.f32 %v730, 1.0
        %v787 = vadd.f32 %v732, 1.0
        %v788 = vadd.f32 %v734, 1.0
        %v789 = vadd.f32 %v736, 1.0
        %v790 = vadd.f32 %v738, 1.0
        %v791 = vadd.f32 %v740, 1.0
        %v792 = vadd.f32 %v742, 1.0
        %v793 = vadd.f32 %v744, 1.0
        %v794 = vadd.f32 %v746, 1.0
        %v795 = vadd.f32 %v748, 1.0
        %v796 = vadd.f32 %v750, 1.0
        %v797 = vadd.f32 %v752, 1.0
        %v798 = vadd.f32 %v754, 1.0
        %v799 = vadd.f32 %v756, 1.0
        %v800 = vadd.f32 %v758, 1.0
        %v801 = vadd.f32 %v760, 1.0
        %v802 = vadd.f32 %v762, 1.0
        %v803 = vadd.f32 %v764, 1.0
        %v804 = vadd.f32 %v766, 1.0
        %v805 = vadd.f32 %v768, 1.0
        %v806 = vadd.f32 %v770, 1.0
        %v807 = vadd.f32 %v772, 1.0
        %v808 = vadd.f32 %v774, 1.0
        %v809 = vadd.f32 %v776, 1.0
        %v810 = vadd.f32 %v778, 1.0
        %v811 = vrcp.pop %v779
        %v812 = vrcp.pop %v780
        %v813 = vrcp.pop %v781
        %v814 = vrcp.pop %v782
        %v815 = vrcp.pop %v783
        %v816 = vrcp.pop %v784
        %v817 = vrcp.pop %v785
        %v818 = vrcp.pop %v786
        %v819 = vrcp.pop %v787
        %v820 = vrcp.pop %v788
        %v821 = vrcp.pop %v789
        %v822 = vrcp.pop %v790
        %v823 = vrcp.pop %v791
        %v824 = vrcp.pop %v792
        %v825 = vrcp.pop %v793
        %v826 = vrcp.pop %v794
        %v827 = vrcp.pop %v795
        %v828 = vrcp.pop %v796
        %v829 = vrcp.pop %v797
        %v830 = vrcp.pop %v798
        %v831 = vrcp.pop %v799
        %v832 = vrcp.pop %v800
        %v833 = vrcp.pop %v801
        %v834 = vrcp.pop %v802
        %v835 = vrcp.pop %v803
        %v836 = vrcp.pop %v804
        %v837 = vrcp.pop %v805
        %v838 = vrcp.pop %v806
        %v839 = vrcp.pop %v807
        %v840 = vrcp.pop %v808
        %v841 = vrcp.pop %v809
        %v842 = vrcp.pop %v810
        %v843 = vmul.f32 %v651, %v811
        %v844 = vmul.f32 %v652, %v812
        %v845 = vmul.f32 %v653, %v813
        %v846 = vmul.f32 %v654, %v814
        %v847 = vmul.f32 %v655, %v815
        %v848 = vmul.f32 %v656, %v816
        %v849 = vmul.f32 %v657, %v817
        %v850 = vmul.f32 %v658, %v818
        %v851 = vmul.f32 %v659, %v819
        %v852 = vmul.f32 %v660, %v820
        %v853 = vmul.f32 %v661, %v821
        %v854 = vmul.f32 %v662, %v822
        %v855 = vmul.f32 %v663, %v823
        %v856 = vmul.f32 %v664, %v824
        %v857 = vmul.f32 %v665, %v825
        %v858 = vmul.f32 %v666, %v826
        %v859 = vmul.f32 %v667, %v827
        %v860 = vmul.f32 %v668, %v828
        %v861 = vmul.f32 %v669, %v829
        %v862 = vmul.f32 %v670, %v830
        %v863 = vmul.f32 %v671, %v831
        %v864 = vmul.f32 %v672, %v832
        %v865 = vmul.f32 %v673, %v833
        %v866 = vmul.f32 %v674, %v834
        %v867 = vmul.f32 %v675, %v835
        %v868 = vmul.f32 %v676, %v836
        %v869 = vmul.f32 %v677, %v837
        %v870 = vmul.f32 %v678, %v838
        %v871 = vmul.f32 %v679, %v839
        %v872 = vmul.f32 %v680, %v840
        %v873 = vmul.f32 %v681, %v841
        %v874 = vmul.f32 %v682, %v842
        %v875 = vpack.c.bf16 %v844, %v843
        %v876 = vpack.c.bf16 %v846, %v845
        %v877 = vpack.c.bf16 %v848, %v847
        %v878 = vpack.c.bf16 %v850, %v849
        %v879 = vpack.c.bf16 %v852, %v851
        %v880 = vpack.c.bf16 %v854, %v853
        %v881 = vpack.c.bf16 %v856, %v855
        %v882 = vpack.c.bf16 %v858, %v857
        %v883 = vpack.c.bf16 %v860, %v859
        %v884 = vpack.c.bf16 %v862, %v861
        %v885 = vpack.c.bf16 %v864, %v863
        %v886 = vpack.c.bf16 %v866, %v865
        %v887 = vpack.c.bf16 %v868, %v867
        %v888 = vpack.c.bf16 %v870, %v869
        %v889 = vpack.c.bf16 %v872, %v871
        %v890 = vpack.c.bf16 %v874, %v873
        %v907 = vunpack.c.l.b16 %v875
        %v908 = vunpack.c.h.b16 %v875
        %v909 = vunpack.c.l.b16 %v876
        %v910 = vunpack.c.h.b16 %v876
        %v911 = vunpack.c.l.b16 %v877
        %v912 = vunpack.c.h.b16 %v877
        %v913 = vunpack.c.l.b16 %v878
        %v914 = vunpack.c.h.b16 %v878
        %v915 = vunpack.c.l.b16 %v879
        %v916 = vunpack.c.h.b16 %v879
        %v917 = vunpack.c.l.b16 %v880
        %v918 = vunpack.c.h.b16 %v880
        %v919 = vunpack.c.l.b16 %v881
        %v920 = vunpack.c.h.b16 %v881
        %v921 = vunpack.c.l.b16 %v882
        %v922 = vunpack.c.h.b16 %v882
        %v923 = vunpack.c.l.b16 %v883
        %v924 = vunpack.c.h.b16 %v883
        %v925 = vunpack.c.l.b16 %v884
        %v926 = vunpack.c.h.b16 %v884
        %v927 = vunpack.c.l.b16 %v885
        %v928 = vunpack.c.h.b16 %v885
        %v929 = vunpack.c.l.b16 %v886
        %v930 = vunpack.c.h.b16 %v886
        %v931 = vunpack.c.l.b16 %v887
        %v932 = vunpack.c.h.b16 %v887
        %v933 = vunpack.c.l.b16 %v888
        %v934 = vunpack.c.h.b16 %v888
        %v935 = vunpack.c.l.b16 %v889
        %v936 = vunpack.c.h.b16 %v889
        %v937 = vunpack.c.l.b16 %v890
        %v938 = vunpack.c.h.b16 %v890
        %v939 = vpack.c.b16 %v907, %v907
        %v940 = vpack.c.b16 %v908, %v908
        %v941 = vpack.c.b16 %v909, %v909
        %v942 = vpack.c.b16 %v910, %v910
        %v943 = vpack.c.b16 %v911, %v911
        %v944 = vpack.c.b16 %v912, %v912
        %v945 = vpack.c.b16 %v913, %v913
        %v946 = vpack.c.b16 %v914, %v914
        %v947 = vpack.c.b16 %v915, %v915
        %v948 = vpack.c.b16 %v916, %v916
        %v949 = vpack.c.b16 %v917, %v917
        %v950 = vpack.c.b16 %v918, %v918
        %v951 = vpack.c.b16 %v919, %v919
        %v952 = vpack.c.b16 %v920, %v920
        %v953 = vpack.c.b16 %v921, %v921
        %v954 = vpack.c.b16 %v922, %v922
        %v955 = vpack.c.b16 %v923, %v923
        %v956 = vpack.c.b16 %v924, %v924
        %v957 = vpack.c.b16 %v925, %v925
        %v958 = vpack.c.b16 %v926, %v926
        %v959 = vpack.c.b16 %v927, %v927
        %v960 = vpack.c.b16 %v928, %v928
        %v961 = vpack.c.b16 %v929, %v929
        %v962 = vpack.c.b16 %v930, %v930
        %v963 = vpack.c.b16 %v931, %v931
        %v964 = vpack.c.b16 %v932, %v932
        %v965 = vpack.c.b16 %v933, %v933
        %v966 = vpack.c.b16 %v934, %v934
        %v967 = vpack.c.b16 %v935, %v935
        %v968 = vpack.c.b16 %v936, %v936
        %v969 = vpack.c.b16 %v937, %v937
        %v970 = vpack.c.b16 %v938, %v938
        %1003 = vst [vmem:[%s248] sm:$0xf] %v939
        %1004 = vst [vmem:[%s248 + $0x4] sm:$0xf] %v940
        %1005 = vst [vmem:[%s248 + $0x8] sm:$0xf] %v941
        %1006 = vst [vmem:[%s248 + $0xc] sm:$0xf] %v942
        %1007 = vst [vmem:[%s248 + $0x10] sm:$0xf] %v943
        %1008 = vst [vmem:[%s248 + $0x14] sm:$0xf] %v944
        %1009 = vst [vmem:[%s248 + $0x18] sm:$0xf] %v945
        %1010 = vst [vmem:[%s248 + $0x1c] sm:$0xf] %v946
        %1011 = vst [vmem:[%s248 + $0x20] sm:$0xf] %v947
        %1012 = vst [vmem:[%s248 + $0x24] sm:$0xf] %v948
        %1013 = vst [vmem:[%s248 + $0x28] sm:$0xf] %v949
        %1014 = vst [vmem:[%s248 + $0x2c] sm:$0xf] %v950
        %1015 = vst [vmem:[%s248 + $0x30] sm:$0xf] %v951
        %1016 = vst [vmem:[%s248 + $0x34] sm:$0xf] %v952
        %1017 = vst [vmem:[%s248 + $0x38] sm:$0xf] %v953
        %1018 = vst [vmem:[%s248 + $0x3c] sm:$0xf] %v954
        %1019 = vst [vmem:[%s248 + $0x40] sm:$0xf] %v955
        %1020 = vst [vmem:[%s248 + $0x44] sm:$0xf] %v956
        %1021 = vst [vmem:[%s248 + $0x48] sm:$0xf] %v957
        %1022 = vst [vmem:[%s248 + $0x4c] sm:$0xf] %v958
        %1023 = vst [vmem:[%s248 + $0x50] sm:$0xf] %v959
        %1024 = vst [vmem:[%s248 + $0x54] sm:$0xf] %v960
        %1025 = vst [vmem:[%s248 + $0x58] sm:$0xf] %v961
        %1026 = vst [vmem:[%s248 + $0x5c] sm:$0xf] %v962
        %1027 = vst [vmem:[%s248 + $0x60] sm:$0xf] %v963
        %1028 = vst [vmem:[%s248 + $0x64] sm:$0xf] %v964
        %1029 = vst [vmem:[%s248 + $0x68] sm:$0xf] %v965
        %1030 = vst [vmem:[%s248 + $0x6c] sm:$0xf] %v966
        %1031 = vst [vmem:[%s248 + $0x70] sm:$0xf] %v967
        %1032 = vst [vmem:[%s248 + $0x74] sm:$0xf] %v968
        %1033 = vst [vmem:[%s248 + $0x78] sm:$0xf] %v969
        %1034 = vst [vmem:[%s248 + $0x7c] sm:$0xf] %v970
        %s1035 = sand.u32 %s135, 1
        %s1036 = scalar_lea.sflag [#allocation4], %s1035
        %s1037 = sand.u32 %s135, 1
        %s1038 = smul.addr %s1037, 128
        %s1039 = scalar_lea.vmem [#allocation7], %s1038
        // Predicated region
        $region45: #{fused_conv3d.1} parent=35 // pred_check
          %p1040 = pneg %p145
        $region46: #{fused_conv3d.1} parent=35 // pred_check_branch
          %1042 = sbr.rel (%p1040) target = $region48
        $region47: #{fused_conv3d.1} parent=35 // pred_region
          %s1043 = smul.u32 32, %s27
          %s1045 = ssub.s32 2048, 2048
          %1046 = vsyncadd %s1036, %s1045
          %s1047 = smul.addr %s26, 32
          %s1048 = sadd.s32 %s1043, %s1047
          %s1049 = smul.addr %s1048, 64
          %s1050 = scalar_lea.hbm %s4, %s1049
          %s1051 = sshll.u32 %s1039, 4
          %s1052 = int_to_ptr.vmem [resolvable:$true] %s1051
          %1057 = dma.vmem_to_hbm [thread:$0]  %s1052, 2048, %s1050, %s1036, 64, 64, 4
        $region48: #{fused_conv3d.1} parent=35 // pred_fallthru
          _
      $region36: #{fused_conv3d.1} parent=5 // pred_fallthru
        _
      %p1058 = scmp.le.s32.totalorder 2, %s17
      // Predicated region
      $region49: #{fused_conv3d.1} parent=5 // pred_check
        %p1059 = pneg %p1058
      $region50: #{fused_conv3d.1} parent=5 // pred_check_branch
        %1061 = sbr.rel (%p1059) target = $region52
      $region51: #{fused_conv3d.1} parent=5 // pred_region
        %s1062 = ssub.s32 %s17, 2
        // Predicated region
        $region53: #{fused_conv3d.1} parent=51 // pred_check
          %p1063 = pneg %p151
        $region54: #{fused_conv3d.1} parent=51 // pred_check_branch
          %1065 = sbr.rel (%p1063) target = $region56
        $region55: #{fused_conv3d.1} parent=51 // pred_region
          %s1066 = sand.u32 %s136, 1
          %s1067 = scalar_lea.sflag [#allocation4], %s1066
          %s1068 = sand.u32 %s136, 1
          %s1069 = smul.addr %s1068, 128
          %s1070 = scalar_lea.vmem [#allocation7], %s1069
          %1071 = dma.done %s1067, 2048
        $region56: #{fused_conv3d.1} parent=51 // pred_fallthru
          _
      $region52: #{fused_conv3d.1} parent=5 // pred_fallthru
        _
    $region6: #{fused_conv3d.1} parent=1 // loop_footer
      %s21 = sadd.s32 1, %s17
    $region7: #{fused_conv3d.1} parent=1 // loop_footer_branch
      %16 = sbr.rel target = $region3
    $region8: #{fused_conv3d.1} parent=1 // loop_exit
      _
    %1072 = vsyncpa [#allocation3], 1
    %s1073 = scalar_lea.sflag [#allocation3], 1
    %1074 = vsyncpa %s1073, 1
    %1075 = vsyncpa [#allocation6], 1
    %1076 = vsyncpa [#allocation4], 1
    %s1077 = scalar_lea.sflag [#allocation4], 1
    %1078 = vsyncpa %s1077, 1

</llo_original>
